<compile_context>
chip_gen: v5e
topology: v5e:2x2
jax: 0.10.0
libtpu: 0.0.40
codegen_flags: <defaults>
</compile_context>

<pallas_src>
import numpy as np
import jax
import jax.numpy as jnp
from jax import lax
from jax.experimental import pallas as pl
from jax.experimental.pallas import tpu as pltpu


def make_kernel(k):
    """Same as NARF/models/stylegan.py::make_kernel, in numpy."""
    k = np.asarray(k, dtype=np.float32)
    if k.ndim == 1:
        k = k[None, :] * k[:, None]
    k = k / k.sum()
    return k


def _round_up(v, m):
    return (v + m - 1) // m * m


def _vmem_limit_bytes():
    cap = 128 * 1024 * 1024
    try:
        cap = int(pltpu.get_tpu_info().vmem_capacity_bytes)
    except Exception:
        pass
    # Leave headroom for compiler scratch (matters most on v7x's 64 MiB VMEM).
    return int(min(cap * 0.70, 100 * 1024 * 1024))


def _build_kernel(*, factor, W, Hq, Ho, Wo, sep_groups, nonsep_taps, mm_dtype):
    """Kernel body with FIR taps baked in as compile-time constants.

    x_ref  : (nc_tile, Hq, factor*W)  -- row-phase-packed input, x.dtype
    mh_ref : (W, Wo) or (K, W, Wo)    -- constant horizontal filter/decimation matrix
    o_ref  : (nc_tile, Ho, Wo)
    """
    f32 = jnp.float32

    def shift_rows(v, s):
        # v: (nc, Hq, W) f32 -> (nc, Ho, W); row oh <- v[:, oh+s, :], zero outside [0, Hq).
        nc = v.shape[0]
        lo = max(0, -s)
        hi = min(Ho, Hq - s)
        if hi <= lo:
            return jnp.zeros((nc, Ho, W), f32)
        core = v[:, lo + s:hi + s, :]
        parts = []
        if lo > 0:
            parts.append(jnp.zeros((nc, lo, W), f32))
        parts.append(core)
        if Ho - hi > 0:
            parts.append(jnp.zeros((nc, Ho - hi, W), f32))
        return parts[0] if len(parts) == 1 else jnp.concatenate(parts, axis=1)

    def hmatmul(lhs, mh):
        # Horizontal 1-D decimating convolution as one MXU matmul over W.
        nc = lhs.shape[0]
        lhs2 = lhs.reshape(nc * Ho, W).astype(mm_dtype)
        out2 = jnp.dot(lhs2, mh, preferred_element_type=f32,
                       precision=lax.Precision.HIGHEST)
        return out2.reshape(nc, Ho, Wo)

    def kernel(x_ref, mh_ref, o_ref):
        # Load + upcast each row-phase plane exactly once (hoisted converts).
        phases = [x_ref[:, :, r * W:(r + 1) * W].astype(f32) for r in range(factor)]

        if sep_groups is not None:
            # Vertical decimating pass; taps with equal weight are grouped
            # (symmetric [1,3,3,1] -> one multiply), normalization folded into mh.
            tmp = None
            for w_rel, taps in sep_groups:
                part = None
                for (r, s) in taps:
                    t = shift_rows(phases[r], s)
                    part = t if part is None else part + t
                if w_rel != 1.0:
                    part = part * w_rel
                tmp = part if tmp is None else tmp + part
            acc = hmatmul(tmp, mh_ref[...])
        else:
            # Non-separable 2-D blur kernel: one horizontal matrix per vertical tap.
            acc = None
            for a, (r, s) in enumerate(nonsep_taps):
                t = shift_rows(phases[r], s)
                prod = hmatmul(t, mh_ref[a])
                acc = prod if acc is None else acc + prod

        o_ref[...] = acc.astype(o_ref.dtype)

    return kernel


def downsample(x, blur_kernel=(1, 3, 3, 1), factor=2):
    """Pallas TPU implementation of the Downsample module forward.

    x : (N, C, H, W) NCHW (PyTorch convention), any float dtype.
    returns (N, C, Ho, Wo) in x.dtype.
    """
    k_in = np.asarray(blur_kernel, dtype=np.float64)
    k2d = np.asarray(make_kernel(blur_kernel), dtype=np.float64)
    Kh, Kw = k2d.shape

    # The module derives the pad from kernel.shape[0] and uses it on both axes.
    p = Kh - factor
    pad0, pad1 = (p + 1) // 2, p // 2

    N, C, H, W = x.shape
    NC = N * C
    Ho = (H + pad0 + pad1 - Kh) // factor + 1
    Wo = (W + pad0 + pad1 - Kw) // factor + 1
    assert Ho > 0 and Wo > 0, "input too small for this blur kernel / factor"

    Hq = -(-H // factor)  # ceil(H / factor): rows per vertical phase
    mm_dtype = jnp.bfloat16 if np.dtype(x.dtype) == np.dtype(jnp.bfloat16) else jnp.float32

    # ---- compile-time tap bookkeeping -------------------------------------------------
    def tap_rs(a):
        d = a - pad0
        return d % factor, d // factor

    def build_mh_row(w1d):
        # mh[w, ow] = w1d[b] at w = factor*ow + b - pad0 (zero-pad handled by clipping).
        m = np.zeros((W, Wo), np.float64)
        ow = np.arange(Wo)
        for b in range(Kw):
            w_idx = factor * ow + b - pad0
            valid = (w_idx >= 0) & (w_idx < W)
            np.add.at(m, (w_idx[valid], ow[valid]), float(w1d[b]))
        return m

    if k_in.ndim == 1:
        # Separable path (the module's default [1,3,3,1] case).
        k1 = k_in / k_in.sum()
        kvf = k1[::-1]           # flipped vertical taps (true convolution)
        khf = k1[::-1]           # flipped horizontal taps
        nz = [(a, float(kvf[a])) for a in range(Kh) if kvf[a] != 0.0]
        wmin = min(abs(w) for _, w in nz)
        groups = {}
        for a, w in nz:
            groups.setdefault(w / wmin, []).append(tap_rs(a))
        sep_groups = tuple((float(wr), tuple(tl)) for wr, tl in groups.items())
        nonsep_taps = None
        mh_np = build_mh_row(khf) * wmin          # fold vertical normalization into mh
        n_mats = 1
    else:
        kf2d = k2d[::-1, ::-1]
        sep_groups = None
        nonsep_taps = tuple(tap_rs(a) for a in range(Kh))
        mh_np = np.stack([build_mh_row(kf2d[a]) for a in range(Kh)], axis=0)
        n_mats = Kh
    mh = jnp.asarray(mh_np, dtype=mm_dtype)

    # ---- free re-views of the input (no HBM relayout) ---------------------------------
    xv = x.reshape(NC, H, W)
    pad_rows = Hq * factor - H
    if pad_rows:  # rare (H not divisible by factor); zero rows are semantically inert
        xv = jnp.pad(xv, ((0, 0), (0, pad_rows), (0, 0)))
    fW = factor * W
    xv = xv.reshape(NC, Hq, fW)

    # ---- channel tile sized from hardware VMEM (padded-tile accounting) ---------------
    in_item = np.dtype(x.dtype).itemsize
    mm_item = np.dtype(mm_dtype).itemsize
    vmem_limit = _vmem_limit_bytes()

    per_ch = (
        2 * _round_up(Hq, 8) * _round_up(fW, 128) * in_item          # input block (x2 buf)
        + 2 * _round_up(Ho, 8) * _round_up(Wo, 128) * in_item        # output block (x2 buf)
        + (factor + 1) * _round_up(Hq, 8) * _round_up(W, 128) * 4    # f32 phases + accum
        + _round_up(Ho, 8) * _round_up(Wo, 128) * 4                  # f32 matmul result
    )
    per_ch = int(per_ch * 1.25)                                      # fudge for temps
    mh_bytes = 2 * n_mats * _round_up(W, 8) * _round_up(Wo, 128) * mm_item
    budget = int(vmem_limit * 0.6) - mh_bytes
    nc_tile = max(1, budget // per_ch)
    nc_tile = min(nc_tile, NC)
    if NC > 1:                                   # >= 2 grid steps so both cores get work
        nc_tile = min(nc_tile, -(-NC // 2))
    steps = -(-NC // nc_tile)
    if steps > 1 and steps % 2:                  # prefer an even number of steps
        nc_tile = -(-NC // (steps + 1))
        steps = -(-NC // nc_tile)

    kernel = _build_kernel(factor=factor, W=W, Hq=Hq, Ho=Ho, Wo=Wo,
                           sep_groups=sep_groups, nonsep_taps=nonsep_taps,
                           mm_dtype=mm_dtype)

    if sep_groups is not None:
        mh_spec = pl.BlockSpec((W, Wo), lambda i: (0, 0))
    else:
        mh_spec = pl.BlockSpec((n_mats, W, Wo), lambda i: (0, 0, 0))

    out = pl.pallas_call(
        kernel,
        out_shape=jax.ShapeDtypeStruct((NC, Ho, Wo), x.dtype),
        grid=(steps,),
        in_specs=[
            pl.BlockSpec((nc_tile, Hq, fW), lambda i: (i, 0, 0)),
            mh_spec,
        ],
        out_specs=pl.BlockSpec((nc_tile, Ho, Wo), lambda i: (i, 0, 0)),
        compiler_params=pltpu.CompilerParams(
            dimension_semantics=("parallel",),
            vmem_limit_bytes=vmem_limit,
        ),
    )(xv, mh)

    return out.reshape(N, C, Ho, Wo)


def downsample_ref(x, blur_kernel=(1, 3, 3, 1), factor=2):
    """Pure-JAX reference (depthwise strided conv) for correctness checking."""
    k = make_kernel(blur_kernel)
    K = k.shape[0]
    p = K - factor
    pad0, pad1 = (p + 1) // 2, p // 2
    N, C, H, W = x.shape
    kf = jnp.asarray(np.ascontiguousarray(k[::-1, ::-1]), jnp.float32)
    rhs = jnp.broadcast_to(kf, (C, 1, K, K)).astype(jnp.float32)
    return lax.conv_general_dilated(
        x.astype(jnp.float32), rhs,
        window_strides=(factor, factor),
        padding=((pad0, pad1), (pad0, pad1)),
        dimension_numbers=("NCHW", "OIHW", "NCHW"),
        feature_group_count=C,
    )


if __name__ == "__main__":
    key = jax.random.PRNGKey(0)
    x = jax.random.normal(key, (2, 4, 16, 16), dtype=jnp.float32)   # NCHW like PyTorch

    down = jax.jit(downsample)
    out = down(x)
    out = jax.block_until_ready(out)

    ref = downsample_ref(x)
    assert out.shape == (2, 4, 8, 8), out.shape
    np.testing.assert_allclose(np.asarray(out, dtype=np.float32), np.asarray(ref),
                               rtol=1e-4, atol=1e-5)

    print("KERNEL_OK")
</pallas_src>

<mosaic_0001>
module attributes {stable_mosaic.version = 11 : i64} {
  func.func @kernel(%arg0: i32, %arg1: memref<4x8x32xf32, #tpu.memory_space<vmem>>, %arg2: memref<16x8xf32, #tpu.memory_space<vmem>>, %arg3: memref<4x8x8xf32, #tpu.memory_space<vmem>>) attributes {dimension_semantics = [#tpu.dimension_semantics<parallel>], iteration_bounds = array<i64: 2>, scalar_prefetch = 0 : i64, scratch_operands = 0 : i64, tpu.core_type = #tpu.core_type<tc>, window_params = [{transform_indices = @transform_0, window_bounds = array<i64: 4, 8, 32>}, {pipeline_mode = #tpu.pipeline_mode<synchronous>, transform_indices = @transform_1, window_bounds = array<i64: 16, 8>}, {transform_indices = @transform_2, window_bounds = array<i64: 4, 8, 8>}]} {
    %c0 = arith.constant 0 : index
    %c0_0 = arith.constant 0 : index
    %c0_1 = arith.constant 0 : index
    %0 = vector.load %arg1[%c0, %c0_0, %c0_1] : memref<4x8x32xf32, #tpu.memory_space<vmem>>, vector<4x8x16xf32>
    %c0_2 = arith.constant 0 : index
    %c0_3 = arith.constant 0 : index
    %c16 = arith.constant 16 : index
    %1 = vector.load %arg1[%c0_2, %c0_3, %c16] : memref<4x8x32xf32, #tpu.memory_space<vmem>>, vector<4x8x16xf32>
    %2 = vector.extract_strided_slice %1 {offsets = [0, 0, 0], sizes = [4, 7, 16], strides = [1, 1, 1]} : vector<4x8x16xf32> to vector<4x7x16xf32>
    %cst = arith.constant 0.000000e+00 : f32
    %3 = vector.broadcast %cst : f32 to vector<4x1x16xf32>
    %4 = tpu.concatenate %3, %2 in 1 : vector<4x1x16xf32>, vector<4x7x16xf32> -> vector<4x8x16xf32>
    %5 = vector.extract_strided_slice %0 {offsets = [0, 1, 0], sizes = [4, 7, 16], strides = [1, 1, 1]} : vector<4x8x16xf32> to vector<4x7x16xf32>
    %cst_4 = arith.constant 0.000000e+00 : f32
    %6 = vector.broadcast %cst_4 : f32 to vector<4x1x16xf32>
    %7 = tpu.concatenate %5, %6 in 1 : vector<4x7x16xf32>, vector<4x1x16xf32> -> vector<4x8x16xf32>
    %8 = arith.addf %4, %7 : vector<4x8x16xf32>
    %9 = arith.addf %0, %1 : vector<4x8x16xf32>
    %cst_5 = arith.constant 3.000000e+00 : f32
    %10 = vector.broadcast %cst_5 : f32 to vector<4x8x16xf32>
    %11 = arith.mulf %9, %10 : vector<4x8x16xf32>
    %12 = arith.addf %8, %11 : vector<4x8x16xf32>
    %c0_6 = arith.constant 0 : index
    %c0_7 = arith.constant 0 : index
    %13 = vector.load %arg2[%c0_6, %c0_7] : memref<16x8xf32, #tpu.memory_space<vmem>>, vector<16x8xf32>
    %14 = vector.shape_cast %12 : vector<4x8x16xf32> to vector<32x16xf32>
    %cst_8 = arith.constant dense<0.000000e+00> : vector<32x8xf32>
    %15 = tpu.matmul %14, %13, %cst_8 {dimension_numbers = #tpu.dot_dimension_numbers<[1], [0], [0], [1], [0, 0, 1, 1], [], []>, precision = #tpu.contract_precision<fp32>} : vector<32x16xf32>, vector<16x8xf32>, vector<32x8xf32> -> vector<32x8xf32>
    %16 = vector.shape_cast %15 : vector<32x8xf32> to vector<4x8x8xf32>
    %c0_9 = arith.constant 0 : index
    %c0_10 = arith.constant 0 : index
    %c0_11 = arith.constant 0 : index
    %17 = vector.load %arg3[%c0_9, %c0_10, %c0_11] : memref<4x8x8xf32, #tpu.memory_space<vmem>>, vector<4x8x8xf32>
    tpu.vector_store %arg3[%c0_9, %c0_10, %c0_11], %16 {strides = array<i32>} : memref<4x8x8xf32, #tpu.memory_space<vmem>>, vector<4x8x8xf32>,
    return
  }
  func.func @transform_0(%arg0: i32) -> (i32, i32, i32) {
    %c0_i32 = arith.constant 0 : i32
    %c0_i32_0 = arith.constant 0 : i32
    %c0_i32_1 = arith.constant 0 : i32
    return %arg0, %c0_i32, %c0_i32_0 : i32, i32, i32
  }
  func.func @transform_1(%arg0: i32) -> (i32, i32) {
    %c0_i32 = arith.constant 0 : i32
    %c0_i32_0 = arith.constant 0 : i32
    %c0_i32_1 = arith.constant 0 : i32
    return %c0_i32, %c0_i32_0 : i32, i32
  }
  func.func @transform_2(%arg0: i32) -> (i32, i32, i32) {
    %c0_i32 = arith.constant 0 : i32
    %c0_i32_0 = arith.constant 0 : i32
    %c0_i32_1 = arith.constant 0 : i32
    return %arg0, %c0_i32, %c0_i32_0 : i32, i32, i32
  }
}

</mosaic_0001>

<llo_original>
// kernel: downsample.1
$region0: #{downsample.1}
  #allocation0 [shape = 'u32[]', space=smem, size = 0x4, offset = 0x4, fixed_abs, tag = 'smem constant byte address 0x4 - core index']
  #allocation1 [shape = 'u32[72,128]{1,0:T(1,128)}', space=vmem, size = 0x9000, scoped, tag = 'internal scratch']
  %s0 = inlined_call_operand.vmem [shape: f32[8,8,32], index: 0, kind: input, shape index: {}]
  %s1 = inlined_call_operand.vmem [shape: f32[16,8], index: 1, kind: input, shape index: {}]
  %s2 = inlined_call_operand.hbm [shape: f32[8,8,8], index: 2, kind: output, shape index: {}]
  %s3 = sld [smem:[#allocation0]]
  $region41: #{downsample.1} parent=0
    _
  %s5 = ssub.s32 1, %s3
  %s6 = scalar_select 0, %s5, %s3
  $region1: #{downsample.1} parent=0
    #allocation2 [shape = 'u8[32768]{0}', space=vmem, size = 0x8000, scoped, tag = 'output window, operand 0']
    #allocation3 [shape = 's32[2]{0}', space=sflag, size = 0x8, scoped, tag = 'scoped memory for downsample.1']
    %7 = vsyncpa [#allocation3], 0
    %s8 = scalar_lea.sflag [#allocation3], 1
    %9 = vsyncpa %s8, 0
    loop: start=0, step=1, limit=4
    $region2: #{downsample.1} parent=1 // loop_pre_header
      _
    $region3: #{downsample.1} parent=1 // loop_header
      %s11 = sphi 0, %s15
      %p12 = scmp.ge.s32.totalorder %s11, 4
      %s21 = sphi 0, %s23
      %s24 = sphi 0, %s21
      %s25 = sphi 0, %s24
      %s41 = sphi 0, %s25
      %s45 = sphi 0, %s45
      %s47 = sphi 0, %s45
      %s48 = sphi 0, %s47
      %s62 = sphi 0, %s48
      %s68 = sphi 0, %s70
      %s71 = sphi 0, %s68
      %s72 = sphi 0, %s71
      %s88 = sphi 0, %s72
    $region4: #{downsample.1} parent=1 // loop_header_branch
      %14 = sbr.rel (%p12) target = $region8
    $region5: #{downsample.1} parent=1 // loop_body
      %s16 = ssub.s32 %s11, 1
      %s17 = ssub.s32 %s11, 2
      %s18 = sadd.s32 %s11, 1
      %s19 = ssub.s32 %s11, %s18
      %p20 = scmp.eq.s32.totalorder %s19, 0
      %s22 = sadd.s32 %s21, 1
      %s23 = scalar_select %p20, %s21, %s22
      %p26 = pneg %p20
      %p27 = scmp.eq.s32.totalorder %s11, 1
      %p28 = por %p26, %p27
      %p29 = scmp.ne.s32.totalorder %s21, %s24
      %p30 = scmp.eq.s32.totalorder %s11, 0
      %p31 = por %p29, %p30
      %p32 = scmp.ne.s32.totalorder %s21, %s24
      %p33 = scmp.eq.s32.totalorder %s16, 1
      %p34 = por %p32, %p33
      %p35 = scmp.ne.s32.totalorder %s24, %s25
      %p36 = scmp.eq.s32.totalorder %s16, 0
      %p37 = por %p35, %p36
      %p38 = scmp.ne.s32.totalorder %s24, %s25
      %p39 = scmp.eq.s32.totalorder %s17, 1
      %p40 = por %p38, %p39
      %p42 = scmp.ne.s32.totalorder %s25, %s41
      %p43 = scmp.eq.s32.totalorder %s17, 0
      %p44 = por %p42, %p43
      %s46 = sadd.s32 %s45, 1
      %p49 = scmp.eq.s32.totalorder %s11, 1
      %p50 = scmp.ne.s32.totalorder %s45, %s47
      %p51 = scmp.eq.s32.totalorder %s11, 0
      %p52 = por %p50, %p51
      %p53 = scmp.ne.s32.totalorder %s45, %s47
      %p54 = scmp.eq.s32.totalorder %s16, 1
      %p55 = por %p53, %p54
      %p56 = scmp.ne.s32.totalorder %s47, %s48
      %p57 = scmp.eq.s32.totalorder %s16, 0
      %p58 = por %p56, %p57
      %p59 = scmp.ne.s32.totalorder %s47, %s48
      %p60 = scmp.eq.s32.totalorder %s17, 1
      %p61 = por %p59, %p60
      %p63 = scmp.ne.s32.totalorder %s48, %s62
      %p64 = scmp.eq.s32.totalorder %s17, 0
      %p65 = por %p63, %p64
      %s66 = ssub.s32 %s11, %s18
      %p67 = scmp.eq.s32.totalorder %s66, 0
      %s69 = sadd.s32 %s68, 1
      %s70 = scalar_select %p67, %s68, %s69
      %p73 = pneg %p67
      %p74 = scmp.eq.s32.totalorder %s11, 1
      %p75 = por %p73, %p74
      %p76 = scmp.ne.s32.totalorder %s68, %s71
      %p77 = scmp.eq.s32.totalorder %s11, 0
      %p78 = por %p76, %p77
      %p79 = scmp.ne.s32.totalorder %s68, %s71
      %p80 = scmp.eq.s32.totalorder %s16, 1
      %p81 = por %p79, %p80
      %p82 = scmp.ne.s32.totalorder %s71, %s72
      %p83 = scmp.eq.s32.totalorder %s16, 0
      %p84 = por %p82, %p83
      %p85 = scmp.ne.s32.totalorder %s71, %s72
      %p86 = scmp.eq.s32.totalorder %s17, 1
      %p87 = por %p85, %p86
      %p89 = scmp.ne.s32.totalorder %s72, %s88
      %p90 = scmp.eq.s32.totalorder %s17, 0
      %p91 = por %p89, %p90
      %p92 = scmp.le.s32.totalorder 1, %s11
      %p93 = scmp.lt.s32.totalorder %s11, 3
      %p94 = pnand %p92, %p93
      %p95 = pneg %p94
      // Predicated region
      $region9: #{downsample.1} parent=5 // pred_check
        _
      $region10: #{downsample.1} parent=5 // pred_check_branch
        %97 = sbr.rel (%p94) target = $region12
      $region11: #{downsample.1} parent=5 // pred_region
        %s98 = ssub.s32 %s11, 1
        // Predicated region
        $region13: #{downsample.1} parent=11 // pred_check
          %p99 = pneg %p58
        $region14: #{downsample.1} parent=11 // pred_check_branch
          %101 = sbr.rel (%p99) target = $region16
        $region15: #{downsample.1} parent=11 // pred_region
          _
        $region16: #{downsample.1} parent=11 // pred_fallthru
          _
      $region12: #{downsample.1} parent=5 // pred_fallthru
        _
      %p102 = scmp.lt.s32.totalorder %s11, 2
      // Predicated region
      $region17: #{downsample.1} parent=5 // pred_check
        %p103 = pneg %p102
      $region18: #{downsample.1} parent=5 // pred_check_branch
        %105 = sbr.rel (%p103) target = $region20
      $region19: #{downsample.1} parent=5 // pred_region
        // Predicated region
        $region21: #{downsample.1} parent=19 // pred_check
          %p106 = pneg %p31
        $region22: #{downsample.1} parent=19 // pred_check_branch
          %108 = sbr.rel (%p106) target = $region24
        $region23: #{downsample.1} parent=19 // pred_region
          %s109 = smul.u32 4, %s11
          %p110 = scmp.lt.s32.totalorder %s109, 7
          %s111 = scalar_select %p110, %s109, 7
          %s112 = smul.addr %s111, 8
          %s113 = scalar_lea.vmem %s0, %s112
          %s114 = smul.u32 4, %s11
        $region24: #{downsample.1} parent=19 // pred_fallthru
          _
      $region20: #{downsample.1} parent=5 // pred_fallthru
        _
      %p115 = scmp.le.s32.totalorder 1, %s11
      %p116 = scmp.lt.s32.totalorder %s11, 3
      %p117 = pnand %p115, %p116
      %p118 = pneg %p117
      // Predicated region
      $region25: #{downsample.1} parent=5 // pred_check
        _
      $region26: #{downsample.1} parent=5 // pred_check_branch
        %120 = sbr.rel (%p117) target = $region28
      $region27: #{downsample.1} parent=5 // pred_region
        %s121 = ssub.s32 %s11, 1
        %s122 = smul.u32 4, %s16
        %p123 = scmp.lt.s32.totalorder %s122, 7
        %s124 = scalar_select %p123, %s122, 7
        %s125 = smul.addr %s124, 8
        %s126 = scalar_lea.vmem %s0, %s125
        %p127 = pneg %p37
        %p128 = pneg %p34
        %p129 = pneg %p58
        %p130 = pneg %p55
        %p131 = pneg %p84
        %p132 = pneg %p81
        %s133 = sand.u32 %s71, 1
        %s134 = scalar_lea.sflag [#allocation3], %s133
        %s135 = sand.u32 %s71, 1
        %s136 = smul.addr %s135, 32
        %s137 = scalar_lea.vmem [#allocation2], %s136
        %s138 = smul.u32 4, %s16
        %p139 = scmp.lt.s32.totalorder %s138, 7
        %s140 = scalar_select %p139, %s138, 7
        %s141 = smul.addr %s140, 8
        %s142 = scalar_lea.vmem %s0, %s141
        %s143 = smul.u32 4, %s16
        %s144 = smul.u32 4, %s16
        %v145 = vld [vmem:[%s142] sm:$0xff]
        %v146 = vld [vmem:[%s142 + $0x8] sm:$0xff]
        %v147 = vld [vmem:[%s142 + $0x10] sm:$0xff]
        %v148 = vld [vmem:[%s142 + $0x18] sm:$0xff]
        %v153 = vrot.slane %v145, 7
        %v154 = vrot.slane %v146, 7
        %v155 = vrot.slane %v147, 7
        %v156 = vrot.slane %v148, 7
        %157 = vrot.lane.b32.xlu0 %v153, 112
        %v158 = vpop.permute.xlu0 %157
        %159 = vrot.lane.b32.xlu0 %v154, 112
        %v160 = vpop.permute.xlu0 %159
        %161 = vrot.lane.b32.xlu0 %v155, 112
        %v162 = vpop.permute.xlu0 %161
        %163 = vrot.lane.b32.xlu0 %v156, 112
        %v164 = vpop.permute.xlu0 %163
        %vm169 = vcmask 1040384
        %v170 = vsel %vm169, 0.0, %v158
        %v171 = vsel %vm169, 0.0, %v160
        %v172 = vsel %vm169, 0.0, %v162
        %v173 = vsel %vm169, 0.0, %v164
        %v174 = vrot.slane %v145, 1
        %v175 = vrot.slane %v146, 1
        %v176 = vrot.slane %v147, 1
        %v177 = vrot.slane %v148, 1
        %vm182 = vcmask 1046528
        %v183 = vsel %vm182, %v174, 0.0
        %v184 = vsel %vm182, %v175, 0.0
        %v185 = vsel %vm182, %v176, 0.0
        %v186 = vsel %vm182, %v177, 0.0
        %v187 = vadd.f32 %v170, %v183
        %v188 = vadd.f32 %v171, %v184
        %v189 = vadd.f32 %v172, %v185
        %v190 = vadd.f32 %v173, %v186
        %191 = vrot.lane.b32.xlu0 %v145, 112
        %v192 = vpop.permute.xlu0 %191
        %193 = vrot.lane.b32.xlu0 %v146, 112
        %v194 = vpop.permute.xlu0 %193
        %195 = vrot.lane.b32.xlu0 %v147, 112
        %v196 = vpop.permute.xlu0 %195
        %197 = vrot.lane.b32.xlu0 %v148, 112
        %v198 = vpop.permute.xlu0 %197
        %v203 = vadd.f32 %v145, %v192
        %v204 = vadd.f32 %v146, %v194
        %v205 = vadd.f32 %v147, %v196
        %v206 = vadd.f32 %v148, %v198
        %v207 = vmul.f32 %v203, 3.0
        %v208 = vmul.f32 %v204, 3.0
        %v209 = vmul.f32 %v205, 3.0
        %v210 = vmul.f32 %v206, 3.0
        %v211 = vadd.f32 %v187, %v207
        %v212 = vadd.f32 %v188, %v208
        %v213 = vadd.f32 %v189, %v209
        %v214 = vadd.f32 %v190, %v210
        %v215 = vld [vmem:[%s1] sm:$0xff]
        %v216 = vld [vmem:[%s1 + $0x8] sm:$0xff]
        %vm217 = vcmask 130048
        %v219 = vsel %vm217, %v211, 0
        %v222 = vsel %vm217, %v212, 0
        %v225 = vsel %vm217, %v213, 0
        %v228 = vsel %vm217, %v214, 0
        %230 = vmatpush.msra.mxu0 0.0
        %231 = vmatpush.msra.mxu0 0.0
        %232 = vmatpush.msra.mxu0 0.0
        %233 = vmatpush.msra.mxu0 0.0
        %234 = vmatpush.msra.mxu0 0.0
        %235 = vmatpush.msra.mxu0 0.0
        %236 = vmatpush.msra.mxu0 0.0
        %237 = vmatpush.msra.mxu0 0.0
        %238 = vmatpush.msra.mxu0 0.0
        %239 = vmatpush.msra.mxu0 0.0
        %240 = vmatpush.msra.mxu0 0.0
        %241 = vmatpush.msra.mxu0 0.0
        %242 = vmatpush.msra.mxu0 0.0
        %243 = vmatpush.msra.mxu0 0.0
        %v244 = vand.u32 %v216, 4294901760
        %245 = vmatpush.msra.mxu0 %v244
        %v246 = vand.u32 %v215, 4294901760
        %247 = vmatpush.msra.mxu0 %v246
        %v248 = vand.u32 %v219, 4294901760
        %v249 = vsub.f32 %v219, %v248
        %v250 = vand.u32 %v249, 4294901760
        %v251 = vsub.f32 %v249, %v250
        %v252 = vand.u32 %v251, 4294901760
        %253 = vmatmul.f32.gmra.mxu0 %v252
        %v254 = vpop.f32.mrf.mxu0
        %v255 = vadd.f32 0.0, %v254
        %v256 = vand.u32 %v222, 4294901760
        %v257 = vsub.f32 %v222, %v256
        %v258 = vand.u32 %v257, 4294901760
        %v259 = vsub.f32 %v257, %v258
        %v260 = vand.u32 %v259, 4294901760
        %261 = vmatmul.f32.gmra.mxu0 %v260
        %v262 = vpop.f32.mrf.mxu0
        %v263 = vadd.f32 0.0, %v262
        %v264 = vand.u32 %v225, 4294901760
        %v265 = vsub.f32 %v225, %v264
        %v266 = vand.u32 %v265, 4294901760
        %v267 = vsub.f32 %v265, %v266
        %v268 = vand.u32 %v267, 4294901760
        %269 = vmatmul.f32.gmra.mxu0 %v268
        %v270 = vpop.f32.mrf.mxu0
        %v271 = vadd.f32 0.0, %v270
        %v272 = vand.u32 %v228, 4294901760
        %v273 = vsub.f32 %v228, %v272
        %v274 = vand.u32 %v273, 4294901760
        %v275 = vsub.f32 %v273, %v274
        %v276 = vand.u32 %v275, 4294901760
        %277 = vmatmul.f32.gmra.mxu0 %v276
        %v278 = vpop.f32.mrf.mxu0
        %v279 = vadd.f32 0.0, %v278
        %280 = vdwg.mxu0
        %281 = vmatpush.msra.mxu0 0.0
        %282 = vmatpush.msra.mxu0 0.0
        %283 = vmatpush.msra.mxu0 0.0
        %284 = vmatpush.msra.mxu0 0.0
        %285 = vmatpush.msra.mxu0 0.0
        %286 = vmatpush.msra.mxu0 0.0
        %287 = vmatpush.msra.mxu0 0.0
        %288 = vmatpush.msra.mxu0 0.0
        %289 = vmatpush.msra.mxu0 0.0
        %290 = vmatpush.msra.mxu0 0.0
        %291 = vmatpush.msra.mxu0 0.0
        %292 = vmatpush.msra.mxu0 0.0
        %293 = vmatpush.msra.mxu0 0.0
        %294 = vmatpush.msra.mxu0 0.0
        %v295 = vand.u32 %v216, 4294901760
        %v296 = vsub.f32 %v216, %v295
        %v297 = vand.u32 %v296, 4294901760
        %v298 = vsub.f32 %v296, %v297
        %v299 = vand.u32 %v298, 4294901760
        %300 = vmatpush.msra.mxu0 %v299
        %v301 = vand.u32 %v215, 4294901760
        %v302 = vsub.f32 %v215, %v301
        %v303 = vand.u32 %v302, 4294901760
        %v304 = vsub.f32 %v302, %v303
        %v305 = vand.u32 %v304, 4294901760
        %306 = vmatpush.msra.mxu0 %v305
        %v307 = vand.u32 %v219, 4294901760
        %308 = vmatmul.f32.gmra.mxu0 %v307
        %v309 = vpop.f32.mrf.mxu0
        %v310 = vadd.f32 %v255, %v309
        %v311 = vand.u32 %v222, 4294901760
        %312 = vmatmul.f32.gmra.mxu0 %v311
        %v313 = vpop.f32.mrf.mxu0
        %v314 = vadd.f32 %v263, %v313
        %v315 = vand.u32 %v225, 4294901760
        %316 = vmatmul.f32.gmra.mxu0 %v315
        %v317 = vpop.f32.mrf.mxu0
        %v318 = vadd.f32 %v271, %v317
        %v319 = vand.u32 %v228, 4294901760
        %320 = vmatmul.f32.gmra.mxu0 %v319
        %v321 = vpop.f32.mrf.mxu0
        %v322 = vadd.f32 %v279, %v321
        %323 = vdwg.mxu0
        %324 = vmatpush.msra.mxu0 0.0
        %325 = vmatpush.msra.mxu0 0.0
        %326 = vmatpush.msra.mxu0 0.0
        %327 = vmatpush.msra.mxu0 0.0
        %328 = vmatpush.msra.mxu0 0.0
        %329 = vmatpush.msra.mxu0 0.0
        %330 = vmatpush.msra.mxu0 0.0
        %331 = vmatpush.msra.mxu0 0.0
        %332 = vmatpush.msra.mxu0 0.0
        %333 = vmatpush.msra.mxu0 0.0
        %334 = vmatpush.msra.mxu0 0.0
        %335 = vmatpush.msra.mxu0 0.0
        %336 = vmatpush.msra.mxu0 0.0
        %337 = vmatpush.msra.mxu0 0.0
        %v338 = vand.u32 %v216, 4294901760
        %v339 = vsub.f32 %v216, %v338
        %340 = vmatpush.msra.mxu0 %v339
        %v341 = vand.u32 %v215, 4294901760
        %v342 = vsub.f32 %v215, %v341
        %343 = vmatpush.msra.mxu0 %v342
        %v344 = vand.u32 %v219, 4294901760
        %v345 = vsub.f32 %v219, %v344
        %346 = vmatmul.f32.gmra.mxu0 %v345
        %v347 = vpop.f32.mrf.mxu0
        %v348 = vadd.f32 %v310, %v347
        %v349 = vand.u32 %v222, 4294901760
        %v350 = vsub.f32 %v222, %v349
        %351 = vmatmul.f32.gmra.mxu0 %v350
        %v352 = vpop.f32.mrf.mxu0
        %v353 = vadd.f32 %v314, %v352
        %v354 = vand.u32 %v225, 4294901760
        %v355 = vsub.f32 %v225, %v354
        %356 = vmatmul.f32.gmra.mxu0 %v355
        %v357 = vpop.f32.mrf.mxu0
        %v358 = vadd.f32 %v318, %v357
        %v359 = vand.u32 %v228, 4294901760
        %v360 = vsub.f32 %v228, %v359
        %361 = vmatmul.f32.gmra.mxu0 %v360
        %v362 = vpop.f32.mrf.mxu0
        %v363 = vadd.f32 %v322, %v362
        %364 = vdwg.mxu0
        %365 = vmatpush.msra.mxu0 0.0
        %366 = vmatpush.msra.mxu0 0.0
        %367 = vmatpush.msra.mxu0 0.0
        %368 = vmatpush.msra.mxu0 0.0
        %369 = vmatpush.msra.mxu0 0.0
        %370 = vmatpush.msra.mxu0 0.0
        %371 = vmatpush.msra.mxu0 0.0
        %372 = vmatpush.msra.mxu0 0.0
        %373 = vmatpush.msra.mxu0 0.0
        %374 = vmatpush.msra.mxu0 0.0
        %375 = vmatpush.msra.mxu0 0.0
        %376 = vmatpush.msra.mxu0 0.0
        %377 = vmatpush.msra.mxu0 0.0
        %378 = vmatpush.msra.mxu0 0.0
        %v379 = vand.u32 %v216, 4294901760
        %380 = vmatpush.msra.mxu0 %v379
        %v381 = vand.u32 %v215, 4294901760
        %382 = vmatpush.msra.mxu0 %v381
        %v383 = vand.u32 %v219, 4294901760
        %v384 = vsub.f32 %v219, %v383
        %v385 = vand.u32 %v384, 4294901760
        %386 = vmatmul.f32.gmra.mxu0 %v385
        %v387 = vpop.f32.mrf.mxu0
        %v388 = vadd.f32 %v348, %v387
        %v389 = vand.u32 %v222, 4294901760
        %v390 = vsub.f32 %v222, %v389
        %v391 = vand.u32 %v390, 4294901760
        %392 = vmatmul.f32.gmra.mxu0 %v391
        %v393 = vpop.f32.mrf.mxu0
        %v394 = vadd.f32 %v353, %v393
        %v395 = vand.u32 %v225, 4294901760
        %v396 = vsub.f32 %v225, %v395
        %v397 = vand.u32 %v396, 4294901760
        %398 = vmatmul.f32.gmra.mxu0 %v397
        %v399 = vpop.f32.mrf.mxu0
        %v400 = vadd.f32 %v358, %v399
        %v401 = vand.u32 %v228, 4294901760
        %v402 = vsub.f32 %v228, %v401
        %v403 = vand.u32 %v402, 4294901760
        %404 = vmatmul.f32.gmra.mxu0 %v403
        %v405 = vpop.f32.mrf.mxu0
        %v406 = vadd.f32 %v363, %v405
        %407 = vdwg.mxu0
        %408 = vmatpush.msra.mxu0 0.0
        %409 = vmatpush.msra.mxu0 0.0
        %410 = vmatpush.msra.mxu0 0.0
        %411 = vmatpush.msra.mxu0 0.0
        %412 = vmatpush.msra.mxu0 0.0
        %413 = vmatpush.msra.mxu0 0.0
        %414 = vmatpush.msra.mxu0 0.0
        %415 = vmatpush.msra.mxu0 0.0
        %416 = vmatpush.msra.mxu0 0.0
        %417 = vmatpush.msra.mxu0 0.0
        %418 = vmatpush.msra.mxu0 0.0
        %419 = vmatpush.msra.mxu0 0.0
        %420 = vmatpush.msra.mxu0 0.0
        %421 = vmatpush.msra.mxu0 0.0
        %v422 = vand.u32 %v216, 4294901760
        %v423 = vsub.f32 %v216, %v422
        %v424 = vand.u32 %v423, 4294901760
        %425 = vmatpush.msra.mxu0 %v424
        %v426 = vand.u32 %v215, 4294901760
        %v427 = vsub.f32 %v215, %v426
        %v428 = vand.u32 %v427, 4294901760
        %429 = vmatpush.msra.mxu0 %v428
        %v430 = vand.u32 %v219, 4294901760
        %431 = vmatmul.f32.gmra.mxu0 %v430
        %v432 = vpop.f32.mrf.mxu0
        %v433 = vadd.f32 %v388, %v432
        %v434 = vand.u32 %v222, 4294901760
        %435 = vmatmul.f32.gmra.mxu0 %v434
        %v436 = vpop.f32.mrf.mxu0
        %v437 = vadd.f32 %v394, %v436
        %v438 = vand.u32 %v225, 4294901760
        %439 = vmatmul.f32.gmra.mxu0 %v438
        %v440 = vpop.f32.mrf.mxu0
        %v441 = vadd.f32 %v400, %v440
        %v442 = vand.u32 %v228, 4294901760
        %443 = vmatmul.f32.gmra.mxu0 %v442
        %v444 = vpop.f32.mrf.mxu0
        %v445 = vadd.f32 %v406, %v444
        %446 = vdwg.mxu0
        %447 = vmatpush.msra.mxu0 0.0
        %448 = vmatpush.msra.mxu0 0.0
        %449 = vmatpush.msra.mxu0 0.0
        %450 = vmatpush.msra.mxu0 0.0
        %451 = vmatpush.msra.mxu0 0.0
        %452 = vmatpush.msra.mxu0 0.0
        %453 = vmatpush.msra.mxu0 0.0
        %454 = vmatpush.msra.mxu0 0.0
        %455 = vmatpush.msra.mxu0 0.0
        %456 = vmatpush.msra.mxu0 0.0
        %457 = vmatpush.msra.mxu0 0.0
        %458 = vmatpush.msra.mxu0 0.0
        %459 = vmatpush.msra.mxu0 0.0
        %460 = vmatpush.msra.mxu0 0.0
        %v461 = vand.u32 %v216, 4294901760
        %462 = vmatpush.msra.mxu0 %v461
        %v463 = vand.u32 %v215, 4294901760
        %464 = vmatpush.msra.mxu0 %v463
        %v465 = vand.u32 %v219, 4294901760
        %466 = vmatmul.f32.gmra.mxu0 %v465
        %v467 = vpop.f32.mrf.mxu0
        %v468 = vadd.f32 %v433, %v467
        %v469 = vand.u32 %v222, 4294901760
        %470 = vmatmul.f32.gmra.mxu0 %v469
        %v471 = vpop.f32.mrf.mxu0
        %v472 = vadd.f32 %v437, %v471
        %v473 = vand.u32 %v225, 4294901760
        %474 = vmatmul.f32.gmra.mxu0 %v473
        %v475 = vpop.f32.mrf.mxu0
        %v476 = vadd.f32 %v441, %v475
        %v477 = vand.u32 %v228, 4294901760
        %478 = vmatmul.f32.gmra.mxu0 %v477
        %v479 = vpop.f32.mrf.mxu0
        %v480 = vadd.f32 %v445, %v479
        %481 = vdwg.mxu0
        %vm482 = vcmask 64512
        %483 = vst.msk [vmem:[%s137] sm:$0xff] %vm482, %v468
        %484 = vst.msk [vmem:[%s137 + $0x8] sm:$0xff] %vm482, %v472
        %485 = vst.msk [vmem:[%s137 + $0x10] sm:$0xff] %vm482, %v476
        %486 = vst.msk [vmem:[%s137 + $0x18] sm:$0xff] %vm482, %v480
        %s487 = sand.u32 %s71, 1
        %s488 = scalar_lea.sflag [#allocation3], %s487
        %s489 = sand.u32 %s71, 1
        %s490 = smul.addr %s489, 32
        %s491 = scalar_lea.vmem [#allocation2], %s490
        // Predicated region
        $region29: #{downsample.1} parent=27 // pred_check
          %p492 = pneg %p81
        $region30: #{downsample.1} parent=27 // pred_check_branch
          %494 = sbr.rel (%p492) target = $region32
        $region31: #{downsample.1} parent=27 // pred_region
          %s495 = smul.u32 4, %s16
          %497 = vsyncadd %s488, 0
          %s498 = smul.addr %s495, 8
          %s499 = scalar_lea.hbm %s2, %s498
          %s500 = sshll.u32 %s491, 4
          %s501 = int_to_ptr.vmem [resolvable:$true] %s500
          %s502 = sshll.u32 %s499, 4
          %s503 = int_to_ptr.hbm [resolvable:$true] %s502
          %508 = dma.vmem_to_hbm [thread:$0]  %s501, 512, %s503, %s488, 128, 128, 8
        $region32: #{downsample.1} parent=27 // pred_fallthru
          _
      $region28: #{downsample.1} parent=5 // pred_fallthru
        _
      %p509 = scmp.le.s32.totalorder 2, %s11
      // Predicated region
      $region33: #{downsample.1} parent=5 // pred_check
        %p510 = pneg %p509
      $region34: #{downsample.1} parent=5 // pred_check_branch
        %512 = sbr.rel (%p510) target = $region36
      $region35: #{downsample.1} parent=5 // pred_region
        %s513 = ssub.s32 %s11, 2
        // Predicated region
        $region37: #{downsample.1} parent=35 // pred_check
          %p514 = pneg %p87
        $region38: #{downsample.1} parent=35 // pred_check_branch
          %516 = sbr.rel (%p514) target = $region40
        $region39: #{downsample.1} parent=35 // pred_region
          %s517 = sand.u32 %s72, 1
          %s518 = scalar_lea.sflag [#allocation3], %s517
          %s519 = sand.u32 %s72, 1
          %s520 = smul.addr %s519, 32
          %s521 = scalar_lea.vmem [#allocation2], %s520
          %523 = dma.done %s518, 512
        $region40: #{downsample.1} parent=35 // pred_fallthru
          _
      $region36: #{downsample.1} parent=5 // pred_fallthru
        _
    $region6: #{downsample.1} parent=1 // loop_footer
      %s15 = sadd.s32 1, %s11
    $region7: #{downsample.1} parent=1 // loop_footer_branch
      %10 = sbr.rel target = $region3
    $region8: #{downsample.1} parent=1 // loop_exit
      _
    %524 = vsyncpa [#allocation3], 1
    %s525 = scalar_lea.sflag [#allocation3], 1
    %526 = vsyncpa %s525, 1

</llo_original>
